<compile_context>
chip_gen: v7x
topology: tpu7x:2x2x1
jax: 0.10.0
libtpu: 0.0.40
codegen_flags: <defaults>
</compile_context>

<pallas_src>
import jax
import jax.numpy as jnp
from jax.experimental import pallas as pl
from jax.experimental.pallas import tpu as pltpu


def _round_up(n, m):
    return ((n + m - 1) // m) * m


def _fcmbcd_kernel(x_ref, mu_ref, inv_sigma_ref,
                   w1_ref, b1_ref, w2_ref, b2_ref, w3_ref, b3_ref,
                   o_ref):
    # Normalize in f32 (forward() semantics; 1/sigma precomputed -> multiply, not divide).
    xn = (x_ref[...] - mu_ref[...]) * inv_sigma_ref[...]

    # Layer 1 (this ensemble member's weights; f32 accumulation on the MXU).
    h = jnp.dot(xn.astype(w1_ref.dtype), w1_ref[...],
                preferred_element_type=jnp.float32) + b1_ref[...]
    h = jnp.maximum(h, 0.0)

    # Layer 2.
    h = jnp.dot(h.astype(w2_ref.dtype), w2_ref[...],
                preferred_element_type=jnp.float32) + b2_ref[...]
    h = jnp.maximum(h, 0.0)

    # Layer 3 (no activation).  Output width padded to 128 lanes -> unmasked vst.
    y = jnp.dot(h.astype(w3_ref.dtype), w3_ref[...],
                preferred_element_type=jnp.float32) + b3_ref[...]
    o_ref[...] = y.astype(o_ref.dtype)


def fcmbcd_forward(x, mu, sigma, w1, b1, w2, b2, w3, b3,
                   *, tile_b=512, use_bf16=False):
    """Pallas forward pass.

    x:  (B, in_size) float32
    mu, sigma: (1, in_size) or (in_size,) float32
    w1: (E, in_size, h1), b1: (E, 1, h1)
    w2: (E, h1, h2),      b2: (E, 1, h2)
    w3: (E, h2, 2*out),   b3: (E, 1, 2*out)
    returns: (E, B, 2*out) float32
    """
    E, in_size, h1 = w1.shape
    _, _, h2 = w2.shape
    _, _, two_out = w3.shape
    B = x.shape[0]

    w_dtype = jnp.bfloat16 if use_bf16 else jnp.float32

    # ---- cheap, O(params) wrapper-side prep (jit the wrapper to hoist/fuse it) ----
    inv_sigma = (1.0 / sigma).reshape(1, in_size).astype(jnp.float32)
    mu2 = mu.reshape(1, in_size).astype(jnp.float32)

    out_pad = _round_up(two_out, 128)
    if out_pad != two_out:
        w3 = jnp.pad(w3, ((0, 0), (0, 0), (0, out_pad - two_out)))
        b3 = jnp.pad(b3, ((0, 0), (0, 0), (0, out_pad - two_out)))

    w1c, w2c, w3c = (w.astype(w_dtype) for w in (w1, w2, w3))
    b1c, b2c, b3c = (b.astype(jnp.float32) for b in (b1, b2, b3))

    # ---- batch tiling (multiple of 8 sublanes; pad B up to a whole number of tiles) ----
    tile_b = max(8, min(int(tile_b), _round_up(B, 8)))
    tile_b = _round_up(tile_b, 8)
    b_pad = _round_up(B, tile_b)
    xp = x.astype(jnp.float32)
    if b_pad != B:
        xp = jnp.pad(xp, ((0, b_pad - B), (0, 0)))
    n_bt = b_pad // tile_b

    # ---- VMEM budget: weights + biases + x/out tiles, double-buffered, plus slack ----
    w_item = 2 if use_bf16 else 4
    resident = ((in_size * h1 + h1 * h2 + h2 * out_pad) * w_item
                + (h1 + h2 + out_pad) * 4
                + tile_b * (in_size + out_pad) * 4
                + 2 * in_size * 4)
    vmem_limit = int(min(60 << 20, max(16 << 20, 2 * resident + (4 << 20))))

    grid = (E, n_bt)  # batch innermost -> per-member weights stay VMEM-resident

    out_padded = pl.pallas_call(
        _fcmbcd_kernel,
        out_shape=jax.ShapeDtypeStruct((E, b_pad, out_pad), jnp.float32),
        grid=grid,
        in_specs=[
            pl.BlockSpec((tile_b, in_size), lambda e, i: (i, 0)),       # x tile
            pl.BlockSpec((1, in_size), lambda e, i: (0, 0)),            # mu
            pl.BlockSpec((1, in_size), lambda e, i: (0, 0)),            # 1/sigma
            pl.BlockSpec((None, in_size, h1), lambda e, i: (e, 0, 0)),  # w1[e]
            pl.BlockSpec((None, 1, h1), lambda e, i: (e, 0, 0)),        # b1[e]
            pl.BlockSpec((None, h1, h2), lambda e, i: (e, 0, 0)),       # w2[e]
            pl.BlockSpec((None, 1, h2), lambda e, i: (e, 0, 0)),        # b2[e]
            pl.BlockSpec((None, h2, out_pad), lambda e, i: (e, 0, 0)),  # w3[e] (padded)
            pl.BlockSpec((None, 1, out_pad), lambda e, i: (e, 0, 0)),   # b3[e] (padded)
        ],
        out_specs=pl.BlockSpec((None, tile_b, out_pad), lambda e, i: (e, i, 0)),
        compiler_params=pltpu.CompilerParams(
            dimension_semantics=("parallel", "parallel"),
            vmem_limit_bytes=vmem_limit),
    )(xp, mu2, inv_sigma, w1c, b1c, w2c, b2c, w3c, b3c)

    # Kernel already produced the (E, B, 2*out) layout; just strip padding.
    return out_padded[:, :B, :two_out]


def fcmbcd_forward_ref(x, mu, sigma, w1, b1, w2, b2, w3, b3):
    """Plain-JAX reference (matches the PyTorch forward())."""
    xn = (x - mu) / sigma
    outs = []
    for e in range(w1.shape[0]):
        h = jnp.maximum(xn @ w1[e] + b1[e], 0.0)
        h = jnp.maximum(h @ w2[e] + b2[e], 0.0)
        outs.append(h @ w3[e] + b3[e])
    return jnp.stack(outs, axis=0)


if __name__ == "__main__":
    # Small, module-consistent config:
    #   in_size=32, n_hids=[32, 32], out_size=8, ensemble_size=4, batch=8
    in_size, n_hids, out_size, E, B = 32, (32, 32), 8, 4, 8
    h1, h2 = n_hids
    two_out = 2 * out_size

    key = jax.random.PRNGKey(0)
    ks = jax.random.split(key, 8)

    x = jax.random.normal(ks[0], (B, in_size), dtype=jnp.float32)

    # mu / sigma as in __init__ (zeros / ones) before any train_model call.
    mu = jnp.zeros((1, in_size), dtype=jnp.float32)
    sigma = jnp.ones((1, in_size), dtype=jnp.float32)

    # Deterministic synthetic parameters (nn.Linear-style stacks per ensemble member,
    # stored transposed as (d_in, d_out) so the kernel computes x @ W).
    def init_linear(k, d_in, d_out):
        kw, kb = jax.random.split(k)
        bound = 1.0 / jnp.sqrt(d_in)
        w = jax.random.uniform(kw, (E, d_in, d_out), jnp.float32, -bound, bound)
        b = jax.random.uniform(kb, (E, 1, d_out), jnp.float32, -bound, bound)
        return w, b

    w1, b1 = init_linear(ks[1], in_size, h1)
    w2, b2 = init_linear(ks[2], h1, h2)
    w3, b3 = init_linear(ks[3], h2, two_out)

    ref = fcmbcd_forward_ref(x, mu, sigma, w1, b1, w2, b2, w3, b3)

    # 1) Default f32 path (single batch tile).
    out = jax.block_until_ready(fcmbcd_forward(x, mu, sigma, w1, b1, w2, b2, w3, b3))
    assert out.shape == (E, B, two_out), out.shape
    assert jnp.allclose(out, ref, atol=1e-5, rtol=1e-5), "f32 mismatch vs reference"

    # 2) Multi-tile path with a non-multiple batch (exercises batch padding + grid).
    B2 = 20
    x2 = jax.random.normal(ks[4], (B2, in_size), dtype=jnp.float32)
    ref2 = fcmbcd_forward_ref(x2, mu, sigma, w1, b1, w2, b2, w3, b3)
    out2 = jax.block_until_ready(
        fcmbcd_forward(x2, mu, sigma, w1, b1, w2, b2, w3, b3, tile_b=16))
    assert out2.shape == (E, B2, two_out), out2.shape
    assert jnp.allclose(out2, ref2, atol=1e-5, rtol=1e-5), "tiled mismatch vs reference"

    # 3) Optional bf16 matmul-input / f32-accumulate path (looser tolerance).
    out_bf16 = jax.block_until_ready(
        fcmbcd_forward(x, mu, sigma, w1, b1, w2, b2, w3, b3, use_bf16=True))
    assert jnp.allclose(out_bf16, ref, atol=1e-1, rtol=1e-1), "bf16 mismatch vs reference"

    # TODO(synk): predict()/predict_next()/train_model() (softplus clamping, sampling,
    #             Adam training) are host-side utilities and are not kernelized here.
    print("KERNEL_OK")
</pallas_src>

<mosaic_0001>
module attributes {stable_mosaic.version = 11 : i64} {
  func.func @_fcmbcd_kernel(%arg0: i32, %arg1: i32, %arg2: memref<8x32xf32, #tpu.memory_space<vmem>>, %arg3: memref<1x32xf32, #tpu.memory_space<vmem>>, %arg4: memref<1x32xf32, #tpu.memory_space<vmem>>, %arg5: memref<1x32x32xf32, #tpu.memory_space<vmem>>, %arg6: memref<1x1x32xf32, #tpu.memory_space<vmem>>, %arg7: memref<1x32x32xf32, #tpu.memory_space<vmem>>, %arg8: memref<1x1x32xf32, #tpu.memory_space<vmem>>, %arg9: memref<1x32x128xf32, #tpu.memory_space<vmem>>, %arg10: memref<1x1x128xf32, #tpu.memory_space<vmem>>, %arg11: memref<1x8x128xf32, #tpu.memory_space<vmem>>) attributes {dimension_semantics = [#tpu.dimension_semantics<parallel>, #tpu.dimension_semantics<parallel>], iteration_bounds = array<i64: 4, 1>, scalar_prefetch = 0 : i64, scratch_operands = 0 : i64, tpu.core_type = #tpu.core_type<tc>, window_params = [{transform_indices = @transform_0, window_bounds = array<i64: 8, 32>}, {pipeline_mode = #tpu.pipeline_mode<synchronous>, transform_indices = @transform_1, window_bounds = array<i64: 1, 32>}, {pipeline_mode = #tpu.pipeline_mode<synchronous>, transform_indices = @transform_2, window_bounds = array<i64: 1, 32>}, {transform_indices = @transform_3, window_bounds = array<i64: 1, 32, 32>}, {transform_indices = @transform_4, window_bounds = array<i64: 1, 1, 32>}, {transform_indices = @transform_5, window_bounds = array<i64: 1, 32, 32>}, {transform_indices = @transform_6, window_bounds = array<i64: 1, 1, 32>}, {transform_indices = @transform_7, window_bounds = array<i64: 1, 32, 128>}, {transform_indices = @transform_8, window_bounds = array<i64: 1, 1, 128>}, {transform_indices = @transform_9, window_bounds = array<i64: 1, 8, 128>}]} {
    %c0 = arith.constant 0 : index
    %c0_0 = arith.constant 0 : index
    %0 = vector.load %arg2[%c0, %c0_0] : memref<8x32xf32, #tpu.memory_space<vmem>>, vector<8x32xf32>
    %c0_1 = arith.constant 0 : index
    %c0_2 = arith.constant 0 : index
    %1 = vector.load %arg3[%c0_1, %c0_2] : memref<1x32xf32, #tpu.memory_space<vmem>>, vector<1x32xf32>
    %2 = vector.broadcast %1 : vector<1x32xf32> to vector<8x32xf32>
    %3 = arith.subf %0, %2 : vector<8x32xf32>
    %c0_3 = arith.constant 0 : index
    %c0_4 = arith.constant 0 : index
    %4 = vector.load %arg4[%c0_3, %c0_4] : memref<1x32xf32, #tpu.memory_space<vmem>>, vector<1x32xf32>
    %5 = vector.broadcast %4 : vector<1x32xf32> to vector<8x32xf32>
    %6 = arith.mulf %3, %5 : vector<8x32xf32>
    %c0_5 = arith.constant 0 : index
    %c0_6 = arith.constant 0 : index
    %c0_7 = arith.constant 0 : index
    %7 = vector.load %arg5[%c0_5, %c0_6, %c0_7] : memref<1x32x32xf32, #tpu.memory_space<vmem>>, vector<1x32x32xf32>
    %8 = vector.shape_cast %7 : vector<1x32x32xf32> to vector<32x32xf32>
    %cst = arith.constant dense<0.000000e+00> : vector<8x32xf32>
    %9 = tpu.matmul %6, %8, %cst {dimension_numbers = #tpu.dot_dimension_numbers<[1], [0], [0], [1], [0, 0, 1, 1], [], []>} : vector<8x32xf32>, vector<32x32xf32>, vector<8x32xf32> -> vector<8x32xf32>
    %c0_8 = arith.constant 0 : index
    %c0_9 = arith.constant 0 : index
    %c0_10 = arith.constant 0 : index
    %10 = vector.load %arg6[%c0_8, %c0_9, %c0_10] : memref<1x1x32xf32, #tpu.memory_space<vmem>>, vector<1x1x32xf32>
    %11 = vector.shape_cast %10 : vector<1x1x32xf32> to vector<1x32xf32>
    %12 = vector.broadcast %11 : vector<1x32xf32> to vector<8x32xf32>
    %13 = arith.addf %9, %12 : vector<8x32xf32>
    %cst_11 = arith.constant 0.000000e+00 : f32
    %14 = vector.broadcast %cst_11 : f32 to vector<8x32xf32>
    %15 = arith.maximumf %13, %14 : vector<8x32xf32>
    %c0_12 = arith.constant 0 : index
    %c0_13 = arith.constant 0 : index
    %c0_14 = arith.constant 0 : index
    %16 = vector.load %arg7[%c0_12, %c0_13, %c0_14] : memref<1x32x32xf32, #tpu.memory_space<vmem>>, vector<1x32x32xf32>
    %17 = vector.shape_cast %16 : vector<1x32x32xf32> to vector<32x32xf32>
    %cst_15 = arith.constant dense<0.000000e+00> : vector<8x32xf32>
    %18 = tpu.matmul %15, %17, %cst_15 {dimension_numbers = #tpu.dot_dimension_numbers<[1], [0], [0], [1], [0, 0, 1, 1], [], []>} : vector<8x32xf32>, vector<32x32xf32>, vector<8x32xf32> -> vector<8x32xf32>
    %c0_16 = arith.constant 0 : index
    %c0_17 = arith.constant 0 : index
    %c0_18 = arith.constant 0 : index
    %19 = vector.load %arg8[%c0_16, %c0_17, %c0_18] : memref<1x1x32xf32, #tpu.memory_space<vmem>>, vector<1x1x32xf32>
    %20 = vector.shape_cast %19 : vector<1x1x32xf32> to vector<1x32xf32>
    %21 = vector.broadcast %20 : vector<1x32xf32> to vector<8x32xf32>
    %22 = arith.addf %18, %21 : vector<8x32xf32>
    %cst_19 = arith.constant 0.000000e+00 : f32
    %23 = vector.broadcast %cst_19 : f32 to vector<8x32xf32>
    %24 = arith.maximumf %22, %23 : vector<8x32xf32>
    %c0_20 = arith.constant 0 : index
    %c0_21 = arith.constant 0 : index
    %c0_22 = arith.constant 0 : index
    %25 = vector.load %arg9[%c0_20, %c0_21, %c0_22] : memref<1x32x128xf32, #tpu.memory_space<vmem>>, vector<1x32x128xf32>
    %26 = vector.shape_cast %25 : vector<1x32x128xf32> to vector<32x128xf32>
    %cst_23 = arith.constant dense<0.000000e+00> : vector<8x128xf32>
    %27 = tpu.matmul %24, %26, %cst_23 {dimension_numbers = #tpu.dot_dimension_numbers<[1], [0], [0], [1], [0, 0, 1, 1], [], []>} : vector<8x32xf32>, vector<32x128xf32>, vector<8x128xf32> -> vector<8x128xf32>
    %c0_24 = arith.constant 0 : index
    %c0_25 = arith.constant 0 : index
    %c0_26 = arith.constant 0 : index
    %28 = vector.load %arg10[%c0_24, %c0_25, %c0_26] : memref<1x1x128xf32, #tpu.memory_space<vmem>>, vector<1x1x128xf32>
    %29 = vector.shape_cast %28 : vector<1x1x128xf32> to vector<1x128xf32>
    %30 = vector.broadcast %29 : vector<1x128xf32> to vector<8x128xf32>
    %31 = arith.addf %27, %30 : vector<8x128xf32>
    %c0_27 = arith.constant 0 : index
    %c0_28 = arith.constant 0 : index
    %c0_29 = arith.constant 0 : index
    %32 = vector.load %arg11[%c0_27, %c0_28, %c0_29] : memref<1x8x128xf32, #tpu.memory_space<vmem>>, vector<1x8x128xf32>
    %33 = vector.shape_cast %32 : vector<1x8x128xf32> to vector<8x128xf32>
    %34 = vector.shape_cast %31 : vector<8x128xf32> to vector<1x8x128xf32>
    tpu.vector_store %arg11[%c0_27, %c0_28, %c0_29], %34 {strides = array<i32>} : memref<1x8x128xf32, #tpu.memory_space<vmem>>, vector<1x8x128xf32>,
    return
  }
  func.func @transform_0(%arg0: i32, %arg1: i32) -> (i32, i32) {
    %c0_i32 = arith.constant 0 : i32
    %c0_i32_0 = arith.constant 0 : i32
    return %arg1, %c0_i32 : i32, i32
  }
  func.func @transform_1(%arg0: i32, %arg1: i32) -> (i32, i32) {
    %c0_i32 = arith.constant 0 : i32
    %c0_i32_0 = arith.constant 0 : i32
    %c0_i32_1 = arith.constant 0 : i32
    return %c0_i32, %c0_i32_0 : i32, i32
  }
  func.func @transform_2(%arg0: i32, %arg1: i32) -> (i32, i32) {
    %c0_i32 = arith.constant 0 : i32
    %c0_i32_0 = arith.constant 0 : i32
    %c0_i32_1 = arith.constant 0 : i32
    return %c0_i32, %c0_i32_0 : i32, i32
  }
  func.func @transform_3(%arg0: i32, %arg1: i32) -> (i32, i32, i32) {
    %c0_i32 = arith.constant 0 : i32
    %c0_i32_0 = arith.constant 0 : i32
    %c0_i32_1 = arith.constant 0 : i32
    return %arg0, %c0_i32, %c0_i32_0 : i32, i32, i32
  }
  func.func @transform_4(%arg0: i32, %arg1: i32) -> (i32, i32, i32) {
    %c0_i32 = arith.constant 0 : i32
    %c0_i32_0 = arith.constant 0 : i32
    %c0_i32_1 = arith.constant 0 : i32
    return %arg0, %c0_i32, %c0_i32_0 : i32, i32, i32
  }
  func.func @transform_5(%arg0: i32, %arg1: i32) -> (i32, i32, i32) {
    %c0_i32 = arith.constant 0 : i32
    %c0_i32_0 = arith.constant 0 : i32
    %c0_i32_1 = arith.constant 0 : i32
    return %arg0, %c0_i32, %c0_i32_0 : i32, i32, i32
  }
  func.func @transform_6(%arg0: i32, %arg1: i32) -> (i32, i32, i32) {
    %c0_i32 = arith.constant 0 : i32
    %c0_i32_0 = arith.constant 0 : i32
    %c0_i32_1 = arith.constant 0 : i32
    return %arg0, %c0_i32, %c0_i32_0 : i32, i32, i32
  }
  func.func @transform_7(%arg0: i32, %arg1: i32) -> (i32, i32, i32) {
    %c0_i32 = arith.constant 0 : i32
    %c0_i32_0 = arith.constant 0 : i32
    %c0_i32_1 = arith.constant 0 : i32
    return %arg0, %c0_i32, %c0_i32_0 : i32, i32, i32
  }
  func.func @transform_8(%arg0: i32, %arg1: i32) -> (i32, i32, i32) {
    %c0_i32 = arith.constant 0 : i32
    %c0_i32_0 = arith.constant 0 : i32
    %c0_i32_1 = arith.constant 0 : i32
    return %arg0, %c0_i32, %c0_i32_0 : i32, i32, i32
  }
  func.func @transform_9(%arg0: i32, %arg1: i32) -> (i32, i32, i32) {
    %c0_i32 = arith.constant 0 : i32
    %c0_i32_0 = arith.constant 0 : i32
    return %arg0, %arg1, %c0_i32 : i32, i32, i32
  }
}

</mosaic_0001>

<llo_original>
// kernel: tpu_custom_call.1
$region0: #{tpu_custom_call.1}
  #allocation0 [shape = 'u32[]', space=smem, size = 0x4, offset = 0x4, fixed_abs, tag = 'smem constant byte address 0x4 - core index']
  #allocation1 [shape = 'u32[144,128]{1,0:T(1,128)}', space=vmem, size = 0x12000, scoped, tag = 'internal scratch']
  %s0 = inlined_call_operand.hbm [shape: f32[8,32], index: 0, kind: input, shape index: {}]
  %s1 = inlined_call_operand.vmem [shape: f32[1,32], index: 1, kind: input, shape index: {}]
  %s2 = inlined_call_operand.vmem [shape: f32[1,32], index: 2, kind: input, shape index: {}]
  %s3 = inlined_call_operand.hbm [shape: f32[4,32,32], index: 3, kind: input, shape index: {}]
  %s4 = inlined_call_operand.vmem [shape: f32[4,1,32], index: 4, kind: input, shape index: {}]
  %s5 = inlined_call_operand.hbm [shape: f32[4,32,32], index: 5, kind: input, shape index: {}]
  %s6 = inlined_call_operand.vmem [shape: f32[4,1,32], index: 6, kind: input, shape index: {}]
  %s7 = inlined_call_operand.hbm [shape: f32[4,32,128], index: 7, kind: input, shape index: {}]
  %s8 = inlined_call_operand.vmem [shape: f32[4,1,128], index: 8, kind: input, shape index: {}]
  %s9 = inlined_call_operand.hbm [shape: f32[4,8,128], index: 9, kind: output, shape index: {}]
  %s10 = sld [smem:[#allocation0]]
  $region85: #{tpu_custom_call.1} parent=0
    _
  %s12 = ssub.s32 1, %s10
  %s13 = scalar_select 0, %s12, %s10
  $region1: #{tpu_custom_call.1} parent=0
    #allocation2 [shape = 'u8[4096]{0}', space=vmem, size = 0x1000, scoped, tag = 'input window, operand 0, single buffered']
    #allocation3 [shape = 's32[2]{0}', space=sflag, size = 0x8, scoped, tag = 'scoped memory for tpu_custom_call.1']
    #allocation4 [shape = 's32[2]{0}', space=sflag, size = 0x8, scoped, tag = 'scoped memory for tpu_custom_call.1']
    #allocation5 [shape = 'u8[32768]{0}', space=vmem, size = 0x8000, scoped, tag = 'input window, operand 3']
    #allocation6 [shape = 's32[2]{0}', space=sflag, size = 0x8, scoped, tag = 'scoped memory for tpu_custom_call.1']
    #allocation7 [shape = 'u8[32768]{0}', space=vmem, size = 0x8000, scoped, tag = 'input window, operand 5']
    #allocation8 [shape = 'u8[32768]{0}', space=vmem, size = 0x8000, scoped, tag = 'input window, operand 7']
    #allocation9 [shape = 's32[2]{0}', space=sflag, size = 0x8, scoped, tag = 'scoped memory for tpu_custom_call.1']
    #allocation10 [shape = 'u8[8192]{0}', space=vmem, size = 0x2000, scoped, tag = 'output window, operand 0']
    %14 = vsyncpa [#allocation3], 0
    %15 = vsyncpa [#allocation6], 0
    %s16 = scalar_lea.sflag [#allocation6], 1
    %17 = vsyncpa %s16, 0
    %18 = vsyncpa [#allocation9], 0
    %s19 = scalar_lea.sflag [#allocation9], 1
    %20 = vsyncpa %s19, 0
    %21 = vsyncpa [#allocation4], 0
    %s22 = scalar_lea.sflag [#allocation4], 1
    %23 = vsyncpa %s22, 0
    loop: start=0, step=1, limit=6
    $region2: #{tpu_custom_call.1} parent=1 // loop_pre_header
      _
    $region3: #{tpu_custom_call.1} parent=1 // loop_header
      %s25 = sphi 0, %s29
      %p26 = scmp.ge.s32.totalorder %s25, 6
      %s32 = sphi 0, %s44
      %s33 = sphi 0, %s40
      %s34 = sphi 0, %s32
      %s35 = sphi 0, %s33
      %s36 = sphi 0, %s34
      %s37 = sphi 0, %s35
      %s47 = sphi 0, %s49
      %s50 = sphi 0, %s47
      %s51 = sphi 0, %s50
      %s67 = sphi 0, %s51
      %s71 = sphi 0, %s71
      %s73 = sphi 0, %s71
      %s74 = sphi 0, %s73
      %s88 = sphi 0, %s74
      %s92 = sphi 0, %s92
      %s94 = sphi 0, %s92
      %s95 = sphi 0, %s94
      %s109 = sphi 0, %s95
      %s115 = sphi 0, %s117
      %s118 = sphi 0, %s115
      %s119 = sphi 0, %s118
      %s135 = sphi 0, %s119
      %s141 = sphi 0, %s143
      %s144 = sphi 0, %s141
      %s145 = sphi 0, %s144
      %s161 = sphi 0, %s145
      %s167 = sphi 0, %s169
      %s170 = sphi 0, %s167
      %s171 = sphi 0, %s170
      %s187 = sphi 0, %s171
      %s193 = sphi 0, %s195
      %s196 = sphi 0, %s193
      %s197 = sphi 0, %s196
      %s213 = sphi 0, %s197
      %s219 = sphi 0, %s221
      %s222 = sphi 0, %s219
      %s223 = sphi 0, %s222
      %s239 = sphi 0, %s223
      %s245 = sphi 0, %s247
      %s248 = sphi 0, %s245
      %s249 = sphi 0, %s248
      %s265 = sphi 0, %s249
      %s273 = sphi 0, %s275
      %s276 = sphi 0, %s273
      %s277 = sphi 0, %s276
      %s293 = sphi 0, %s277
    $region4: #{tpu_custom_call.1} parent=1 // loop_header_branch
      %28 = sbr.rel (%p26) target = $region8
    $region5: #{tpu_custom_call.1} parent=1 // loop_body
      %s30 = ssub.s32 %s25, 1
      %s31 = ssub.s32 %s25, 2
      %s38 = sadd.s32 1, %s33
      %p39 = scmp.ge.s32.totalorder %s38, 1
      %s40 = scalar_select %p39, 0, %s38
      %s41 = sadd.s32 1, %s32
      %s42 = scalar_select %p39, %s41, %s32
      %p43 = scmp.ge.s32.totalorder %s42, 4
      %s44 = scalar_select %p43, 0, %s42
      %s45 = ssub.s32 %s33, %s40
      %p46 = scmp.eq.s32.totalorder %s45, 0
      %s48 = sadd.s32 %s47, 1
      %s49 = scalar_select %p46, %s47, %s48
      %p52 = pneg %p46
      %p53 = scmp.eq.s32.totalorder %s25, 3
      %p54 = por %p52, %p53
      %p55 = scmp.ne.s32.totalorder %s47, %s50
      %p56 = scmp.eq.s32.totalorder %s25, 0
      %p57 = por %p55, %p56
      %p58 = scmp.ne.s32.totalorder %s47, %s50
      %p59 = scmp.eq.s32.totalorder %s30, 3
      %p60 = por %p58, %p59
      %p61 = scmp.ne.s32.totalorder %s50, %s51
      %p62 = scmp.eq.s32.totalorder %s30, 0
      %p63 = por %p61, %p62
      %p64 = scmp.ne.s32.totalorder %s50, %s51
      %p65 = scmp.eq.s32.totalorder %s31, 3
      %p66 = por %p64, %p65
      %p68 = scmp.ne.s32.totalorder %s51, %s67
      %p69 = scmp.eq.s32.totalorder %s31, 0
      %p70 = por %p68, %p69
      %s72 = sadd.s32 %s71, 1
      %p75 = scmp.eq.s32.totalorder %s25, 3
      %p76 = scmp.ne.s32.totalorder %s71, %s73
      %p77 = scmp.eq.s32.totalorder %s25, 0
      %p78 = por %p76, %p77
      %p79 = scmp.ne.s32.totalorder %s71, %s73
      %p80 = scmp.eq.s32.totalorder %s30, 3
      %p81 = por %p79, %p80
      %p82 = scmp.ne.s32.totalorder %s73, %s74
      %p83 = scmp.eq.s32.totalorder %s30, 0
      %p84 = por %p82, %p83
      %p85 = scmp.ne.s32.totalorder %s73, %s74
      %p86 = scmp.eq.s32.totalorder %s31, 3
      %p87 = por %p85, %p86
      %p89 = scmp.ne.s32.totalorder %s74, %s88
      %p90 = scmp.eq.s32.totalorder %s31, 0
      %p91 = por %p89, %p90
      %s93 = sadd.s32 %s92, 1
      %p96 = scmp.eq.s32.totalorder %s25, 3
      %p97 = scmp.ne.s32.totalorder %s92, %s94
      %p98 = scmp.eq.s32.totalorder %s25, 0
      %p99 = por %p97, %p98
      %p100 = scmp.ne.s32.totalorder %s92, %s94
      %p101 = scmp.eq.s32.totalorder %s30, 3
      %p102 = por %p100, %p101
      %p103 = scmp.ne.s32.totalorder %s94, %s95
      %p104 = scmp.eq.s32.totalorder %s30, 0
      %p105 = por %p103, %p104
      %p106 = scmp.ne.s32.totalorder %s94, %s95
      %p107 = scmp.eq.s32.totalorder %s31, 3
      %p108 = por %p106, %p107
      %p110 = scmp.ne.s32.totalorder %s95, %s109
      %p111 = scmp.eq.s32.totalorder %s31, 0
      %p112 = por %p110, %p111
      %s113 = ssub.s32 %s32, %s44
      %p114 = scmp.eq.s32.totalorder %s113, 0
      %s116 = sadd.s32 %s115, 1
      %s117 = scalar_select %p114, %s115, %s116
      %p120 = pneg %p114
      %p121 = scmp.eq.s32.totalorder %s25, 3
      %p122 = por %p120, %p121
      %p123 = scmp.ne.s32.totalorder %s115, %s118
      %p124 = scmp.eq.s32.totalorder %s25, 0
      %p125 = por %p123, %p124
      %p126 = scmp.ne.s32.totalorder %s115, %s118
      %p127 = scmp.eq.s32.totalorder %s30, 3
      %p128 = por %p126, %p127
      %p129 = scmp.ne.s32.totalorder %s118, %s119
      %p130 = scmp.eq.s32.totalorder %s30, 0
      %p131 = por %p129, %p130
      %p132 = scmp.ne.s32.totalorder %s118, %s119
      %p133 = scmp.eq.s32.totalorder %s31, 3
      %p134 = por %p132, %p133
      %p136 = scmp.ne.s32.totalorder %s119, %s135
      %p137 = scmp.eq.s32.totalorder %s31, 0
      %p138 = por %p136, %p137
      %s139 = ssub.s32 %s32, %s44
      %p140 = scmp.eq.s32.totalorder %s139, 0
      %s142 = sadd.s32 %s141, 1
      %s143 = scalar_select %p140, %s141, %s142
      %p146 = pneg %p140
      %p147 = scmp.eq.s32.totalorder %s25, 3
      %p148 = por %p146, %p147
      %p149 = scmp.ne.s32.totalorder %s141, %s144
      %p150 = scmp.eq.s32.totalorder %s25, 0
      %p151 = por %p149, %p150
      %p152 = scmp.ne.s32.totalorder %s141, %s144
      %p153 = scmp.eq.s32.totalorder %s30, 3
      %p154 = por %p152, %p153
      %p155 = scmp.ne.s32.totalorder %s144, %s145
      %p156 = scmp.eq.s32.totalorder %s30, 0
      %p157 = por %p155, %p156
      %p158 = scmp.ne.s32.totalorder %s144, %s145
      %p159 = scmp.eq.s32.totalorder %s31, 3
      %p160 = por %p158, %p159
      %p162 = scmp.ne.s32.totalorder %s145, %s161
      %p163 = scmp.eq.s32.totalorder %s31, 0
      %p164 = por %p162, %p163
      %s165 = ssub.s32 %s32, %s44
      %p166 = scmp.eq.s32.totalorder %s165, 0
      %s168 = sadd.s32 %s167, 1
      %s169 = scalar_select %p166, %s167, %s168
      %p172 = pneg %p166
      %p173 = scmp.eq.s32.totalorder %s25, 3
      %p174 = por %p172, %p173
      %p175 = scmp.ne.s32.totalorder %s167, %s170
      %p176 = scmp.eq.s32.totalorder %s25, 0
      %p177 = por %p175, %p176
      %p178 = scmp.ne.s32.totalorder %s167, %s170
      %p179 = scmp.eq.s32.totalorder %s30, 3
      %p180 = por %p178, %p179
      %p181 = scmp.ne.s32.totalorder %s170, %s171
      %p182 = scmp.eq.s32.totalorder %s30, 0
      %p183 = por %p181, %p182
      %p184 = scmp.ne.s32.totalorder %s170, %s171
      %p185 = scmp.eq.s32.totalorder %s31, 3
      %p186 = por %p184, %p185
      %p188 = scmp.ne.s32.totalorder %s171, %s187
      %p189 = scmp.eq.s32.totalorder %s31, 0
      %p190 = por %p188, %p189
      %s191 = ssub.s32 %s32, %s44
      %p192 = scmp.eq.s32.totalorder %s191, 0
      %s194 = sadd.s32 %s193, 1
      %s195 = scalar_select %p192, %s193, %s194
      %p198 = pneg %p192
      %p199 = scmp.eq.s32.totalorder %s25, 3
      %p200 = por %p198, %p199
      %p201 = scmp.ne.s32.totalorder %s193, %s196
      %p202 = scmp.eq.s32.totalorder %s25, 0
      %p203 = por %p201, %p202
      %p204 = scmp.ne.s32.totalorder %s193, %s196
      %p205 = scmp.eq.s32.totalorder %s30, 3
      %p206 = por %p204, %p205
      %p207 = scmp.ne.s32.totalorder %s196, %s197
      %p208 = scmp.eq.s32.totalorder %s30, 0
      %p209 = por %p207, %p208
      %p210 = scmp.ne.s32.totalorder %s196, %s197
      %p211 = scmp.eq.s32.totalorder %s31, 3
      %p212 = por %p210, %p211
      %p214 = scmp.ne.s32.totalorder %s197, %s213
      %p215 = scmp.eq.s32.totalorder %s31, 0
      %p216 = por %p214, %p215
      %s217 = ssub.s32 %s32, %s44
      %p218 = scmp.eq.s32.totalorder %s217, 0
      %s220 = sadd.s32 %s219, 1
      %s221 = scalar_select %p218, %s219, %s220
      %p224 = pneg %p218
      %p225 = scmp.eq.s32.totalorder %s25, 3
      %p226 = por %p224, %p225
      %p227 = scmp.ne.s32.totalorder %s219, %s222
      %p228 = scmp.eq.s32.totalorder %s25, 0
      %p229 = por %p227, %p228
      %p230 = scmp.ne.s32.totalorder %s219, %s222
      %p231 = scmp.eq.s32.totalorder %s30, 3
      %p232 = por %p230, %p231
      %p233 = scmp.ne.s32.totalorder %s222, %s223
      %p234 = scmp.eq.s32.totalorder %s30, 0
      %p235 = por %p233, %p234
      %p236 = scmp.ne.s32.totalorder %s222, %s223
      %p237 = scmp.eq.s32.totalorder %s31, 3
      %p238 = por %p236, %p237
      %p240 = scmp.ne.s32.totalorder %s223, %s239
      %p241 = scmp.eq.s32.totalorder %s31, 0
      %p242 = por %p240, %p241
      %s243 = ssub.s32 %s32, %s44
      %p244 = scmp.eq.s32.totalorder %s243, 0
      %s246 = sadd.s32 %s245, 1
      %s247 = scalar_select %p244, %s245, %s246
      %p250 = pneg %p244
      %p251 = scmp.eq.s32.totalorder %s25, 3
      %p252 = por %p250, %p251
      %p253 = scmp.ne.s32.totalorder %s245, %s248
      %p254 = scmp.eq.s32.totalorder %s25, 0
      %p255 = por %p253, %p254
      %p256 = scmp.ne.s32.totalorder %s245, %s248
      %p257 = scmp.eq.s32.totalorder %s30, 3
      %p258 = por %p256, %p257
      %p259 = scmp.ne.s32.totalorder %s248, %s249
      %p260 = scmp.eq.s32.totalorder %s30, 0
      %p261 = por %p259, %p260
      %p262 = scmp.ne.s32.totalorder %s248, %s249
      %p263 = scmp.eq.s32.totalorder %s31, 3
      %p264 = por %p262, %p263
      %p266 = scmp.ne.s32.totalorder %s249, %s265
      %p267 = scmp.eq.s32.totalorder %s31, 0
      %p268 = por %p266, %p267
      %s269 = ssub.s32 %s32, %s44
      %s270 = ssub.s32 %s33, %s40
      %s271 = sor.u32 %s269, %s270
      %p272 = scmp.eq.s32.totalorder %s271, 0
      %s274 = sadd.s32 %s273, 1
      %s275 = scalar_select %p272, %s273, %s274
      %p278 = pneg %p272
      %p279 = scmp.eq.s32.totalorder %s25, 3
      %p280 = por %p278, %p279
      %p281 = scmp.ne.s32.totalorder %s273, %s276
      %p282 = scmp.eq.s32.totalorder %s25, 0
      %p283 = por %p281, %p282
      %p284 = scmp.ne.s32.totalorder %s273, %s276
      %p285 = scmp.eq.s32.totalorder %s30, 3
      %p286 = por %p284, %p285
      %p287 = scmp.ne.s32.totalorder %s276, %s277
      %p288 = scmp.eq.s32.totalorder %s30, 0
      %p289 = por %p287, %p288
      %p290 = scmp.ne.s32.totalorder %s276, %s277
      %p291 = scmp.eq.s32.totalorder %s31, 3
      %p292 = por %p290, %p291
      %p294 = scmp.ne.s32.totalorder %s277, %s293
      %p295 = scmp.eq.s32.totalorder %s31, 0
      %p296 = por %p294, %p295
      %p297 = scmp.le.s32.totalorder 1, %s25
      %p298 = scmp.lt.s32.totalorder %s25, 5
      %p299 = pnand %p297, %p298
      %p300 = pneg %p299
      // Predicated region
      $region9: #{tpu_custom_call.1} parent=5 // pred_check
        _
      $region10: #{tpu_custom_call.1} parent=5 // pred_check_branch
        %302 = sbr.rel (%p299) target = $region12
      $region11: #{tpu_custom_call.1} parent=5 // pred_region
        %s303 = ssub.s32 %s25, 1
        // Predicated region
        $region13: #{tpu_custom_call.1} parent=11 // pred_check
          %p304 = pneg %p63
        $region14: #{tpu_custom_call.1} parent=11 // pred_check_branch
          %306 = sbr.rel (%p304) target = $region16
        $region15: #{tpu_custom_call.1} parent=11 // pred_region
          %s308 = ssub.s32 128, 128
          %309 = vsyncadd [#allocation3], %s308
          %s310 = smul.addr %s35, 128
          %s311 = scalar_lea.hbm %s0, %s310
          %s313 = sshll.u32 [#allocation2], 4
          %s314 = int_to_ptr.vmem [resolvable:$true] %s313
          %316 = dma.hbm_to_vmem [thread:$0]  %s311, 128, %s314, [#allocation3]
        $region16: #{tpu_custom_call.1} parent=11 // pred_fallthru
          _
        // Predicated region
        $region17: #{tpu_custom_call.1} parent=11 // pred_check
          %p317 = pneg %p84
        $region18: #{tpu_custom_call.1} parent=11 // pred_check_branch
          %319 = sbr.rel (%p317) target = $region20
        $region19: #{tpu_custom_call.1} parent=11 // pred_region
          _
        $region20: #{tpu_custom_call.1} parent=11 // pred_fallthru
          _
        // Predicated region
        $region21: #{tpu_custom_call.1} parent=11 // pred_check
          %p320 = pneg %p105
        $region22: #{tpu_custom_call.1} parent=11 // pred_check_branch
          %322 = sbr.rel (%p320) target = $region24
        $region23: #{tpu_custom_call.1} parent=11 // pred_region
          _
        $region24: #{tpu_custom_call.1} parent=11 // pred_fallthru
          _
      $region12: #{tpu_custom_call.1} parent=5 // pred_fallthru
        _
      %p323 = scmp.lt.s32.totalorder %s25, 4
      // Predicated region
      $region25: #{tpu_custom_call.1} parent=5 // pred_check
        %p324 = pneg %p323
      $region26: #{tpu_custom_call.1} parent=5 // pred_check_branch
        %326 = sbr.rel (%p324) target = $region28
      $region27: #{tpu_custom_call.1} parent=5 // pred_region
        // Predicated region
        $region29: #{tpu_custom_call.1} parent=27 // pred_check
          %p327 = pneg %p125
        $region30: #{tpu_custom_call.1} parent=27 // pred_check_branch
          %329 = sbr.rel (%p327) target = $region32
        $region31: #{tpu_custom_call.1} parent=27 // pred_region
          %s330 = sand.u32 %s25, 1
          %s331 = scalar_lea.sflag [#allocation6], %s330
          %s332 = sand.u32 %s115, 1
          %s333 = smul.addr %s332, 32
          %s334 = scalar_lea.vmem [#allocation5], %s333
          %s336 = ssub.s32 512, 512
          %337 = vsyncadd %s331, %s336
          %s338 = smul.addr %s32, 4
          %s339 = smul.addr %s338, 128
          %s340 = scalar_lea.hbm %s3, %s339
          %s341 = sshll.u32 %s334, 4
          %s342 = int_to_ptr.vmem [resolvable:$true] %s341
          %347 = dma.hbm_to_vmem [thread:$0]  %s340, 512, %s342, %s331, 128, 128, 8
        $region32: #{tpu_custom_call.1} parent=27 // pred_fallthru
          _
        // Predicated region
        $region33: #{tpu_custom_call.1} parent=27 // pred_check
          %p348 = pneg %p151
        $region34: #{tpu_custom_call.1} parent=27 // pred_check_branch
          %350 = sbr.rel (%p348) target = $region36
        $region35: #{tpu_custom_call.1} parent=27 // pred_region
          %p351 = scmp.lt.s32.totalorder %s32, 3
          %s352 = scalar_select %p351, %s32, 3
          %s353 = scalar_lea.vmem %s4, %s352
        $region36: #{tpu_custom_call.1} parent=27 // pred_fallthru
          _
        // Predicated region
        $region37: #{tpu_custom_call.1} parent=27 // pred_check
          %p354 = pneg %p177
        $region38: #{tpu_custom_call.1} parent=27 // pred_check_branch
          %356 = sbr.rel (%p354) target = $region40
        $region39: #{tpu_custom_call.1} parent=27 // pred_region
          %s357 = sand.u32 %s25, 1
          %s358 = scalar_lea.sflag [#allocation6], %s357
          %s359 = sand.u32 %s167, 1
          %s360 = smul.addr %s359, 32
          %s361 = scalar_lea.vmem [#allocation7], %s360
          %s363 = ssub.s32 512, 512
          %364 = vsyncadd %s358, %s363
          %s365 = smul.addr %s32, 4
          %s366 = smul.addr %s365, 128
          %s367 = scalar_lea.hbm %s5, %s366
          %s368 = sshll.u32 %s361, 4
          %s369 = int_to_ptr.vmem [resolvable:$true] %s368
          %374 = dma.hbm_to_vmem [thread:$0]  %s367, 512, %s369, %s358, 128, 128, 8
        $region40: #{tpu_custom_call.1} parent=27 // pred_fallthru
          _
        // Predicated region
        $region41: #{tpu_custom_call.1} parent=27 // pred_check
          %p375 = pneg %p203
        $region42: #{tpu_custom_call.1} parent=27 // pred_check_branch
          %377 = sbr.rel (%p375) target = $region44
        $region43: #{tpu_custom_call.1} parent=27 // pred_region
          %p378 = scmp.lt.s32.totalorder %s32, 3
          %s379 = scalar_select %p378, %s32, 3
          %s380 = scalar_lea.vmem %s6, %s379
        $region44: #{tpu_custom_call.1} parent=27 // pred_fallthru
          _
        // Predicated region
        $region45: #{tpu_custom_call.1} parent=27 // pred_check
          %p381 = pneg %p229
        $region46: #{tpu_custom_call.1} parent=27 // pred_check_branch
          %383 = sbr.rel (%p381) target = $region48
        $region47: #{tpu_custom_call.1} parent=27 // pred_region
          %s384 = sand.u32 %s219, 1
          %s385 = scalar_lea.sflag [#allocation9], %s384
          %s386 = sand.u32 %s219, 1
          %s387 = smul.addr %s386, 32
          %s388 = scalar_lea.vmem [#allocation8], %s387
          %s390 = ssub.s32 512, 512
          %391 = vsyncadd %s385, %s390
          %s392 = smul.addr %s32, 4
          %s393 = smul.addr %s392, 128
          %s394 = scalar_lea.hbm %s7, %s393
          %s395 = sshll.u32 %s388, 4
          %s396 = int_to_ptr.vmem [resolvable:$true] %s395
          %401 = dma.hbm_to_vmem [thread:$0]  %s394, 512, %s396, %s385, 128, 128, 8
        $region48: #{tpu_custom_call.1} parent=27 // pred_fallthru
          _
        // Predicated region
        $region49: #{tpu_custom_call.1} parent=27 // pred_check
          %p402 = pneg %p255
        $region50: #{tpu_custom_call.1} parent=27 // pred_check_branch
          %404 = sbr.rel (%p402) target = $region52
        $region51: #{tpu_custom_call.1} parent=27 // pred_region
          %p405 = scmp.lt.s32.totalorder %s32, 3
          %s406 = scalar_select %p405, %s32, 3
          %s407 = scalar_lea.vmem %s8, %s406
        $region52: #{tpu_custom_call.1} parent=27 // pred_fallthru
          _
      $region28: #{tpu_custom_call.1} parent=5 // pred_fallthru
        _
      %p408 = scmp.le.s32.totalorder 1, %s25
      %p409 = scmp.lt.s32.totalorder %s25, 5
      %p410 = pnand %p408, %p409
      %p411 = pneg %p410
      // Predicated region
      $region53: #{tpu_custom_call.1} parent=5 // pred_check
        _
      $region54: #{tpu_custom_call.1} parent=5 // pred_check_branch
        %413 = sbr.rel (%p410) target = $region56
      $region55: #{tpu_custom_call.1} parent=5 // pred_region
        %s414 = ssub.s32 %s25, 1
        // Predicated region
        $region57: #{tpu_custom_call.1} parent=55 // pred_check
          %p415 = pneg %p63
        $region58: #{tpu_custom_call.1} parent=55 // pred_check_branch
          %417 = sbr.rel (%p415) target = $region60
        $region59: #{tpu_custom_call.1} parent=55 // pred_region
          %418 = dma.done [#allocation3], 128
        $region60: #{tpu_custom_call.1} parent=55 // pred_fallthru
          _
        %s419 = sand.u32 %s30, 1
        %s420 = scalar_lea.sflag [#allocation6], %s419
        %s421 = sand.u32 %s118, 1
        %s422 = smul.addr %s421, 32
        %s423 = scalar_lea.vmem [#allocation5], %s422
        // Predicated region
        $region61: #{tpu_custom_call.1} parent=55 // pred_check
          %p424 = pneg %p131
        $region62: #{tpu_custom_call.1} parent=55 // pred_check_branch
          %426 = sbr.rel (%p424) target = $region64
        $region63: #{tpu_custom_call.1} parent=55 // pred_region
          %427 = dma.done %s420, 512
        $region64: #{tpu_custom_call.1} parent=55 // pred_fallthru
          _
        %s428 = sand.u32 %s30, 1
        %s429 = scalar_lea.sflag [#allocation6], %s428
        %s430 = sand.u32 %s170, 1
        %s431 = smul.addr %s430, 32
        %s432 = scalar_lea.vmem [#allocation7], %s431
        // Predicated region
        $region65: #{tpu_custom_call.1} parent=55 // pred_check
          %p433 = pneg %p183
        $region66: #{tpu_custom_call.1} parent=55 // pred_check_branch
          %435 = sbr.rel (%p433) target = $region68
        $region67: #{tpu_custom_call.1} parent=55 // pred_region
          %436 = dma.done %s429, 512
        $region68: #{tpu_custom_call.1} parent=55 // pred_fallthru
          _
        %s437 = sand.u32 %s222, 1
        %s438 = scalar_lea.sflag [#allocation9], %s437
        %s439 = sand.u32 %s222, 1
        %s440 = smul.addr %s439, 32
        %s441 = scalar_lea.vmem [#allocation8], %s440
        // Predicated region
        $region69: #{tpu_custom_call.1} parent=55 // pred_check
          %p442 = pneg %p235
        $region70: #{tpu_custom_call.1} parent=55 // pred_check_branch
          %444 = sbr.rel (%p442) target = $region72
        $region71: #{tpu_custom_call.1} parent=55 // pred_region
          %445 = dma.done %s438, 512
        $region72: #{tpu_custom_call.1} parent=55 // pred_fallthru
          _
        %p446 = pneg %p63
        %p447 = pneg %p60
        %p448 = pneg %p84
        %p449 = pneg %p81
        %p450 = pneg %p105
        %p451 = pneg %p102
        %s452 = sand.u32 %s30, 1
        %s453 = scalar_lea.sflag [#allocation6], %s452
        %s454 = sand.u32 %s118, 1
        %s455 = smul.addr %s454, 32
        %s456 = scalar_lea.vmem [#allocation5], %s455
        %p457 = pneg %p131
        %p458 = pneg %p128
        %p459 = scmp.lt.s32.totalorder %s34, 3
        %s460 = scalar_select %p459, %s34, 3
        %s461 = scalar_lea.vmem %s4, %s460
        %p462 = pneg %p157
        %p463 = pneg %p154
        %s464 = sand.u32 %s30, 1
        %s465 = scalar_lea.sflag [#allocation6], %s464
        %s466 = sand.u32 %s170, 1
        %s467 = smul.addr %s466, 32
        %s468 = scalar_lea.vmem [#allocation7], %s467
        %p469 = pneg %p183
        %p470 = pneg %p180
        %p471 = scmp.lt.s32.totalorder %s34, 3
        %s472 = scalar_select %p471, %s34, 3
        %s473 = scalar_lea.vmem %s6, %s472
        %p474 = pneg %p209
        %p475 = pneg %p206
        %s476 = sand.u32 %s222, 1
        %s477 = scalar_lea.sflag [#allocation9], %s476
        %s478 = sand.u32 %s222, 1
        %s479 = smul.addr %s478, 32
        %s480 = scalar_lea.vmem [#allocation8], %s479
        %p481 = pneg %p235
        %p482 = pneg %p232
        %p483 = scmp.lt.s32.totalorder %s34, 3
        %s484 = scalar_select %p483, %s34, 3
        %s485 = scalar_lea.vmem %s8, %s484
        %p486 = pneg %p261
        %p487 = pneg %p258
        %p488 = pneg %p289
        %p489 = pneg %p286
        %s490 = sand.u32 %s276, 1
        %s491 = scalar_lea.sflag [#allocation4], %s490
        %s492 = sand.u32 %s276, 1
        %s493 = smul.addr %s492, 8
        %s494 = scalar_lea.vmem [#allocation10], %s493
        %p495 = scmp.lt.s32.totalorder %s34, 3
        %s496 = scalar_select %p495, %s34, 3
        %s497 = scalar_lea.vmem %s4, %s496
        %p498 = scmp.lt.s32.totalorder %s34, 3
        %s499 = scalar_select %p498, %s34, 3
        %s500 = scalar_lea.vmem %s6, %s499
        %p501 = scmp.lt.s32.totalorder %s34, 3
        %s502 = scalar_select %p501, %s34, 3
        %s503 = scalar_lea.vmem %s8, %s502
        %v504 = vld [vmem:[#allocation2] sm:$0xff]
        %v505 = vld [vmem:[%s1] sm:$0x1]
        %v507 = vlaneseq
        %v508 = vshrl.u32 %v507, 7
        %v509 = vsub.s32 0, %v508
        %v510 = vrot.slane %v505, %v509
        %v512 = vsub.f32 %v504, %v510
        %v513 = vld [vmem:[%s2] sm:$0x1]
        %v515 = vlaneseq
        %v516 = vshrl.u32 %v515, 7
        %v517 = vsub.s32 0, %v516
        %v518 = vrot.slane %v513, %v517
        %v520 = vmul.f32 %v512, %v518
        %v521 = vld [vmem:[%s423] sm:$0xff]
        %v522 = vld [vmem:[%s423 + $0x8] sm:$0xff]
        %v523 = vld [vmem:[%s423 + $0x10] sm:$0xff]
        %v524 = vld [vmem:[%s423 + $0x18] sm:$0xff]
        %v525 = vld [vmem:[%s497] sm:$0x1]
        %v527 = vlaneseq
        %v528 = vshrl.u32 %v527, 7
        %v529 = vsub.s32 0, %v528
        %v530 = vrot.slane %v525, %v529
        %vm532 = vcmask 261120
        %v534 = vsel %vm532, %v520, 0
        %536 = vmatprep.subr.mxu0 0.0
        %537 = vmatpush1.msra.mxu0 %v521
        %538 = vmatprep.subr.mxu0 0.0
        %539 = vmatpush1.msra.mxu0 %v522
        %540 = vmatprep.subr.mxu0 0.0
        %541 = vmatpush1.msra.mxu0 %v523
        %542 = vmatprep.subr.mxu0 0.0
        %543 = vmatpush1.msra.mxu0 %v524
        %544 = vmatprep.subr.mxu0 0.0
        %545 = vmatpush1.msra.mxu0 0.0
        %546 = vmatprep.subr.mxu0 0.0
        %547 = vmatpush1.msra.mxu0 0.0
        %548 = vmatprep.subr.mxu0 0.0
        %549 = vmatpush1.msra.mxu0 0.0
        %550 = vmatprep.subr.mxu0 0.0
        %551 = vmatpush1.msra.mxu0 0.0
        %552 = vmatprep.subr.mxu0 0.0
        %553 = vmatpush1.msra.mxu0 0.0
        %554 = vmatprep.subr.mxu0 0.0
        %555 = vmatpush1.msra.mxu0 0.0
        %556 = vmatprep.subr.mxu0 0.0
        %557 = vmatpush1.msra.mxu0 0.0
        %558 = vmatprep.subr.mxu0 0.0
        %559 = vmatpush1.msra.mxu0 0.0
        %560 = vmatprep.subr.mxu0 0.0
        %561 = vmatpush1.msra.mxu0 0.0
        %562 = vmatprep.subr.mxu0 0.0
        %563 = vmatpush1.msra.mxu0 0.0
        %564 = vmatprep.subr.mxu0 0.0
        %565 = vmatpush1.msra.mxu0 0.0
        %566 = vmatprep.subr.mxu0 0.0
        %567 = vmatpush1.msra.mxu0 0.0
        %568 = vmatprep.subr.mxu0 0.0
        %569 = vmatpush1.msra.mxu0 0.0
        %570 = vmatprep.subr.mxu0 0.0
        %571 = vmatpush1.msra.mxu0 0.0
        %572 = vmatprep.subr.mxu0 0.0
        %573 = vmatpush1.msra.mxu0 0.0
        %574 = vmatprep.subr.mxu0 0.0
        %575 = vmatpush1.msra.mxu0 0.0
        %576 = vmatprep.subr.mxu0 0.0
        %577 = vmatpush1.msra.mxu0 0.0
        %578 = vmatprep.subr.mxu0 0.0
        %579 = vmatpush1.msra.mxu0 0.0
        %580 = vmatprep.subr.mxu0 0.0
        %581 = vmatpush1.msra.mxu0 0.0
        %582 = vmatprep.subr.mxu0 0.0
        %583 = vmatpush1.msra.mxu0 0.0
        %584 = vmatprep.subr.mxu0 0.0
        %585 = vmatpush1.msra.mxu0 0.0
        %586 = vmatprep.subr.mxu0 0.0
        %587 = vmatpush1.msra.mxu0 0.0
        %588 = vmatprep.subr.mxu0 0.0
        %589 = vmatpush1.msra.mxu0 0.0
        %590 = vmatprep.subr.mxu0 0.0
        %591 = vmatpush1.msra.mxu0 0.0
        %592 = vmatprep.subr.mxu0 0.0
        %593 = vmatpush1.msra.mxu0 0.0
        %594 = vmatprep.subr.mxu0 0.0
        %595 = vmatpush1.msra.mxu0 0.0
        %596 = vmatprep.subr.mxu0 0.0
        %597 = vmatpush1.msra.mxu0 0.0
        %598 = vmatprep.subr.mxu0 0.0
        %599 = vmatpush1.msra.mxu0 0.0
        %600 = vmatprep.mubr.f32.mxu0 0.0
        %601 = vmatmul.mubr.f32.gmra.mrb[0].mxu0 %v534
        %v602 = vpop.f32.mrb[0].mxu0
        %v603 = vadd.f32 %v530, %v602
        %v604 = vpop.f32.mrb[0].mxu0
        %605 = vdwg.mxu0
        %v606 = vmax.f32 %v603, 0.0
        %v607 = vld [vmem:[%s432] sm:$0xff]
        %v608 = vld [vmem:[%s432 + $0x8] sm:$0xff]
        %v609 = vld [vmem:[%s432 + $0x10] sm:$0xff]
        %v610 = vld [vmem:[%s432 + $0x18] sm:$0xff]
        %v611 = vld [vmem:[%s500] sm:$0x1]
        %v613 = vlaneseq
        %v614 = vshrl.u32 %v613, 7
        %v615 = vsub.s32 0, %v614
        %v616 = vrot.slane %v611, %v615
        %v619 = vsel %vm532, %v606, 0
        %621 = vmatprep.subr.mxu0 0.0
        %622 = vmatpush1.msra.mxu0 %v607
        %623 = vmatprep.subr.mxu0 0.0
        %624 = vmatpush1.msra.mxu0 %v608
        %625 = vmatprep.subr.mxu0 0.0
        %626 = vmatpush1.msra.mxu0 %v609
        %627 = vmatprep.subr.mxu0 0.0
        %628 = vmatpush1.msra.mxu0 %v610
        %629 = vmatprep.subr.mxu0 0.0
        %630 = vmatpush1.msra.mxu0 0.0
        %631 = vmatprep.subr.mxu0 0.0
        %632 = vmatpush1.msra.mxu0 0.0
        %633 = vmatprep.subr.mxu0 0.0
        %634 = vmatpush1.msra.mxu0 0.0
        %635 = vmatprep.subr.mxu0 0.0
        %636 = vmatpush1.msra.mxu0 0.0
        %637 = vmatprep.subr.mxu0 0.0
        %638 = vmatpush1.msra.mxu0 0.0
        %639 = vmatprep.subr.mxu0 0.0
        %640 = vmatpush1.msra.mxu0 0.0
        %641 = vmatprep.subr.mxu0 0.0
        %642 = vmatpush1.msra.mxu0 0.0
        %643 = vmatprep.subr.mxu0 0.0
        %644 = vmatpush1.msra.mxu0 0.0
        %645 = vmatprep.subr.mxu0 0.0
        %646 = vmatpush1.msra.mxu0 0.0
        %647 = vmatprep.subr.mxu0 0.0
        %648 = vmatpush1.msra.mxu0 0.0
        %649 = vmatprep.subr.mxu0 0.0
        %650 = vmatpush1.msra.mxu0 0.0
        %651 = vmatprep.subr.mxu0 0.0
        %652 = vmatpush1.msra.mxu0 0.0
        %653 = vmatprep.subr.mxu0 0.0
        %654 = vmatpush1.msra.mxu0 0.0
        %655 = vmatprep.subr.mxu0 0.0
        %656 = vmatpush1.msra.mxu0 0.0
        %657 = vmatprep.subr.mxu0 0.0
        %658 = vmatpush1.msra.mxu0 0.0
        %659 = vmatprep.subr.mxu0 0.0
        %660 = vmatpush1.msra.mxu0 0.0
        %661 = vmatprep.subr.mxu0 0.0
        %662 = vmatpush1.msra.mxu0 0.0
        %663 = vmatprep.subr.mxu0 0.0
        %664 = vmatpush1.msra.mxu0 0.0
        %665 = vmatprep.subr.mxu0 0.0
        %666 = vmatpush1.msra.mxu0 0.0
        %667 = vmatprep.subr.mxu0 0.0
        %668 = vmatpush1.msra.mxu0 0.0
        %669 = vmatprep.subr.mxu0 0.0
        %670 = vmatpush1.msra.mxu0 0.0
        %671 = vmatprep.subr.mxu0 0.0
        %672 = vmatpush1.msra.mxu0 0.0
        %673 = vmatprep.subr.mxu0 0.0
        %674 = vmatpush1.msra.mxu0 0.0
        %675 = vmatprep.subr.mxu0 0.0
        %676 = vmatpush1.msra.mxu0 0.0
        %677 = vmatprep.subr.mxu0 0.0
        %678 = vmatpush1.msra.mxu0 0.0
        %679 = vmatprep.subr.mxu0 0.0
        %680 = vmatpush1.msra.mxu0 0.0
        %681 = vmatprep.subr.mxu0 0.0
        %682 = vmatpush1.msra.mxu0 0.0
        %683 = vmatprep.subr.mxu0 0.0
        %684 = vmatpush1.msra.mxu0 0.0
        %685 = vmatprep.mubr.f32.mxu0 0.0
        %686 = vmatmul.mubr.f32.gmra.mrb[0].mxu0 %v619
        %v687 = vpop.f32.mrb[0].mxu0
        %v688 = vadd.f32 %v616, %v687
        %v689 = vpop.f32.mrb[0].mxu0
        %690 = vdwg.mxu0
        %v691 = vmax.f32 %v688, 0.0
        %v692 = vld [vmem:[%s441] sm:$0xff]
        %v693 = vld [vmem:[%s441 + $0x8] sm:$0xff]
        %v694 = vld [vmem:[%s441 + $0x10] sm:$0xff]
        %v695 = vld [vmem:[%s441 + $0x18] sm:$0xff]
        %v696 = vld [vmem:[%s503] sm:$0x1]
        %v698 = vlaneseq
        %v699 = vshrl.u32 %v698, 7
        %v700 = vsub.s32 0, %v699
        %v701 = vrot.slane %v696, %v700
        %v704 = vsel %vm532, %v691, 0
        %706 = vmatprep.subr.mxu0 0.0
        %707 = vmatpush1.msra.mxu0 %v692
        %708 = vmatprep.subr.mxu0 0.0
        %709 = vmatpush1.msra.mxu0 %v693
        %710 = vmatprep.subr.mxu0 0.0
        %711 = vmatpush1.msra.mxu0 %v694
        %712 = vmatprep.subr.mxu0 0.0
        %713 = vmatpush1.msra.mxu0 %v695
        %714 = vmatprep.subr.mxu0 0.0
        %715 = vmatpush1.msra.mxu0 0.0
        %716 = vmatprep.subr.mxu0 0.0
        %717 = vmatpush1.msra.mxu0 0.0
        %718 = vmatprep.subr.mxu0 0.0
        %719 = vmatpush1.msra.mxu0 0.0
        %720 = vmatprep.subr.mxu0 0.0
        %721 = vmatpush1.msra.mxu0 0.0
        %722 = vmatprep.subr.mxu0 0.0
        %723 = vmatpush1.msra.mxu0 0.0
        %724 = vmatprep.subr.mxu0 0.0
        %725 = vmatpush1.msra.mxu0 0.0
        %726 = vmatprep.subr.mxu0 0.0
        %727 = vmatpush1.msra.mxu0 0.0
        %728 = vmatprep.subr.mxu0 0.0
        %729 = vmatpush1.msra.mxu0 0.0
        %730 = vmatprep.subr.mxu0 0.0
        %731 = vmatpush1.msra.mxu0 0.0
        %732 = vmatprep.subr.mxu0 0.0
        %733 = vmatpush1.msra.mxu0 0.0
        %734 = vmatprep.subr.mxu0 0.0
        %735 = vmatpush1.msra.mxu0 0.0
        %736 = vmatprep.subr.mxu0 0.0
        %737 = vmatpush1.msra.mxu0 0.0
        %738 = vmatprep.subr.mxu0 0.0
        %739 = vmatpush1.msra.mxu0 0.0
        %740 = vmatprep.subr.mxu0 0.0
        %741 = vmatpush1.msra.mxu0 0.0
        %742 = vmatprep.subr.mxu0 0.0
        %743 = vmatpush1.msra.mxu0 0.0
        %744 = vmatprep.subr.mxu0 0.0
        %745 = vmatpush1.msra.mxu0 0.0
        %746 = vmatprep.subr.mxu0 0.0
        %747 = vmatpush1.msra.mxu0 0.0
        %748 = vmatprep.subr.mxu0 0.0
        %749 = vmatpush1.msra.mxu0 0.0
        %750 = vmatprep.subr.mxu0 0.0
        %751 = vmatpush1.msra.mxu0 0.0
        %752 = vmatprep.subr.mxu0 0.0
        %753 = vmatpush1.msra.mxu0 0.0
        %754 = vmatprep.subr.mxu0 0.0
        %755 = vmatpush1.msra.mxu0 0.0
        %756 = vmatprep.subr.mxu0 0.0
        %757 = vmatpush1.msra.mxu0 0.0
        %758 = vmatprep.subr.mxu0 0.0
        %759 = vmatpush1.msra.mxu0 0.0
        %760 = vmatprep.subr.mxu0 0.0
        %761 = vmatpush1.msra.mxu0 0.0
        %762 = vmatprep.subr.mxu0 0.0
        %763 = vmatpush1.msra.mxu0 0.0
        %764 = vmatprep.subr.mxu0 0.0
        %765 = vmatpush1.msra.mxu0 0.0
        %766 = vmatprep.subr.mxu0 0.0
        %767 = vmatpush1.msra.mxu0 0.0
        %768 = vmatprep.subr.mxu0 0.0
        %769 = vmatpush1.msra.mxu0 0.0
        %770 = vmatprep.mubr.f32.mxu0 0.0
        %771 = vmatmul.mubr.f32.gmra.mrb[0].mxu0 %v704
        %v772 = vpop.f32.mrb[0].mxu0
        %v773 = vadd.f32 %v701, %v772
        %v774 = vpop.f32.mrb[0].mxu0
        %775 = vdwg.mxu0
        %776 = vst [vmem:[%s494] sm:$0xff] %v773
        %s777 = sand.u32 %s276, 1
        %s778 = scalar_lea.sflag [#allocation4], %s777
        %s779 = sand.u32 %s276, 1
        %s780 = smul.addr %s779, 8
        %s781 = scalar_lea.vmem [#allocation10], %s780
        // Predicated region
        $region73: #{tpu_custom_call.1} parent=55 // pred_check
          %p782 = pneg %p286
        $region74: #{tpu_custom_call.1} parent=55 // pred_check_branch
          %784 = sbr.rel (%p782) target = $region76
        $region75: #{tpu_custom_call.1} parent=55 // pred_region
          %s786 = ssub.s32 128, 128
          %787 = vsyncadd %s778, %s786
          %s788 = sadd.s32 %s35, %s34
          %s789 = smul.addr %s788, 128
          %s790 = scalar_lea.hbm %s9, %s789
          %s792 = sshll.u32 %s781, 4
          %s793 = int_to_ptr.vmem [resolvable:$true] %s792
          %795 = dma.vmem_to_hbm [thread:$0]  %s793, 128, %s790, %s778
        $region76: #{tpu_custom_call.1} parent=55 // pred_fallthru
          _
      $region56: #{tpu_custom_call.1} parent=5 // pred_fallthru
        _
      %p796 = scmp.le.s32.totalorder 2, %s25
      // Predicated region
      $region77: #{tpu_custom_call.1} parent=5 // pred_check
        %p797 = pneg %p796
      $region78: #{tpu_custom_call.1} parent=5 // pred_check_branch
        %799 = sbr.rel (%p797) target = $region80
      $region79: #{tpu_custom_call.1} parent=5 // pred_region
        %s800 = ssub.s32 %s25, 2
        // Predicated region
        $region81: #{tpu_custom_call.1} parent=79 // pred_check
          %p801 = pneg %p292
        $region82: #{tpu_custom_call.1} parent=79 // pred_check_branch
          %803 = sbr.rel (%p801) target = $region84
        $region83: #{tpu_custom_call.1} parent=79 // pred_region
          %s804 = sand.u32 %s277, 1
          %s805 = scalar_lea.sflag [#allocation4], %s804
          %s806 = sand.u32 %s277, 1
          %s807 = smul.addr %s806, 8
          %s808 = scalar_lea.vmem [#allocation10], %s807
          %809 = dma.done %s805, 128
        $region84: #{tpu_custom_call.1} parent=79 // pred_fallthru
          _
      $region80: #{tpu_custom_call.1} parent=5 // pred_fallthru
        _
    $region6: #{tpu_custom_call.1} parent=1 // loop_footer
      %s29 = sadd.s32 1, %s25
    $region7: #{tpu_custom_call.1} parent=1 // loop_footer_branch
      %24 = sbr.rel target = $region3
    $region8: #{tpu_custom_call.1} parent=1 // loop_exit
      _
    %810 = vsyncpa [#allocation3], 1
    %s811 = scalar_lea.sflag [#allocation3], 1
    %812 = vsyncpa %s811, 1
    %813 = vsyncpa [#allocation6], 1
    %s814 = scalar_lea.sflag [#allocation6], 1
    %815 = vsyncpa %s814, 1
    %816 = vsyncpa [#allocation9], 1
    %s817 = scalar_lea.sflag [#allocation9], 1
    %818 = vsyncpa %s817, 1
    %819 = vsyncpa [#allocation4], 1
    %s820 = scalar_lea.sflag [#allocation4], 1
    %821 = vsyncpa %s820, 1

</llo_original>
